<compile_context>
chip_gen: v7x
topology: tpu7x:2x2x1
jax: 0.10.0
libtpu: 0.0.40
codegen_flags: <defaults>
</compile_context>

<pallas_src>
import functools
import math

import jax
import jax.numpy as jnp
from jax import lax
from jax.experimental import pallas as pl
from jax.experimental.pallas import tpu as pltpu


def _lane_rotate(x, off):
    """out[:, i] = x[:, (i + off) % R] for a static integer offset.

    Written as two static lane slices + one concat, which Mosaic lowers to a
    lane rotation/select on the XLU (equivalent to a pltpu.roll), keeping the
    VPU/MXU slots free.
    """
    r = x.shape[1]
    k = off % r
    if k == 0:
        return x
    return jnp.concatenate([x[:, k:], x[:, :k]], axis=1)


def bottleneck_kernel(x_ref, w1_ref, w2_ref, w3_ref, b1_ref, b2_ref, b3_ref,
                      mask_ref, o_ref, *, img_w):
    # Channels-first, rows-on-lanes layout (R = images_per_block * H * W):
    #   x_ref    : (Cin,  R)   f32   input rows on the lane axis
    #   w1_ref   : (P,  Cin)   bf16  conv1 1x1 weight (bn1 scale folded)
    #   w2_ref   : (9, P, P)   bf16  conv2 3x3 weight, one (P,P) slab per tap
    #   w3_ref   : (Cout, P)   bf16  conv3 1x1 weight (bn3 scale folded)
    #   b1/b2/b3 : (C, 1)      f32   bn shifts (broadcast along lanes)
    #   mask_ref : (9, P, R)   f32   0/1 zero-padding masks per 3x3 tap
    #   o_ref    : (Cout, R)   f32   lane-dense output block
    r = x_ref.shape[1]
    p = w2_ref.shape[1]
    f32 = jnp.float32
    bf16 = jnp.bfloat16

    x = x_ref[...]                                   # f32, reused for residual

    # ---- conv1 (1x1) + bn1 + relu :  (P,Cin) @ (Cin,R) ----
    y1 = jnp.dot(w1_ref[...], x.astype(bf16), preferred_element_type=f32)
    y1 = jnp.maximum(y1 + b1_ref[...], 0.0)

    # ---- conv2 (3x3, stride 1, pad 1) + bn2 + relu ----
    # 9 accumulated small MXU dots; each tap is a lane rotation of y1 plus a
    # precomputed boundary mask (zero-padding / cross-image wrap handling).
    y2 = jnp.zeros((p, r), f32)
    for t in range(9):
        di, dj = divmod(t, 3)
        off = (di - 1) * img_w + (dj - 1)            # lane offset of this tap
        src = _lane_rotate(y1, off)
        if off != 0:
            src = src * mask_ref[t]                  # zero wrapped / padding lanes
        y2 = y2 + jnp.dot(w2_ref[t], src.astype(bf16),
                          preferred_element_type=f32)
    y2 = jnp.maximum(y2 + b2_ref[...], 0.0)

    # ---- conv3 (1x1) + bn3, identity residual, relu (all full lane width) ----
    y3 = jnp.dot(w3_ref[...], y2.astype(bf16), preferred_element_type=f32)
    o_ref[...] = jnp.maximum(y3 + b3_ref[...] + x, 0.0).astype(o_ref.dtype)


def _make_tap_masks(nb, h, w, p):
    """(9, P, nb*h*w) f32 masks: 1 where the 3x3 tap reads inside the image."""
    i = jnp.arange(h)[:, None]
    j = jnp.arange(w)[None, :]
    rows = []
    for di in range(3):
        for dj in range(3):
            ok = ((i + di - 1 >= 0) & (i + di - 1 < h) &
                  (j + dj - 1 >= 0) & (j + dj - 1 < w))
            mvec = jnp.tile(ok.astype(jnp.float32).reshape(-1), (nb,))
            rows.append(jnp.broadcast_to(mvec[None, :], (p, nb * h * w)))
    return jnp.stack(rows, axis=0)


def _default_images_per_block(n, h, w):
    # Smallest whole-image row block whose lane extent is a multiple of 128:
    # every block stays lane-dense / (8,128)-tileable, and several blocks give
    # the pipeline >=2 steps (DMA overlap; v7x's 2nd TensorCore via "parallel").
    nb = 128 // math.gcd(128, h * w)
    return nb if (nb <= n and n % nb == 0) else n


def fold_params(w1, w2_hwio, w3, s1, b1, s2, b2, s3, b3,
                *, compute_dtype=jnp.bfloat16):
    """Fold BN scales into the conv weights (eval mode), transpose into the
    channels-first matmul layout and cast MXU operands to bf16."""
    p = w1.shape[1]
    w1t = (w1 * s1[None, :]).T.astype(compute_dtype)                    # (P, Cin)
    w2t = jnp.transpose(w2_hwio * s2[None, None, None, :],
                        (0, 1, 3, 2)).reshape(9, p, p).astype(compute_dtype)
    w3t = (w3 * s3[None, :]).T.astype(compute_dtype)                    # (Cout, P)
    return (w1t, w2t, w3t,
            b1.astype(jnp.float32).reshape(-1, 1),
            b2.astype(jnp.float32).reshape(-1, 1),
            b3.astype(jnp.float32).reshape(-1, 1))


def bottleneck_forward(x_nchw, params, *, images_per_block=None):
    """x_nchw: (N, Cin, H, W).  params from fold_params()."""
    w1t, w2t, w3t, b1, b2, b3 = params
    n, cin, h, w = x_nchw.shape
    p = w1t.shape[0]
    cout = w3t.shape[0]
    assert cin == cout, "identity residual requires inplanes == planes*expansion"

    if images_per_block is None:
        images_per_block = _default_images_per_block(n, h, w)
    nb = images_per_block
    assert n % nb == 0
    r_blk = nb * h * w
    assert r_blk % 128 == 0 or n // nb == 1, "row blocks must stay lane-aligned"

    rows = n * h * w
    # channels-first, rows-on-lanes: (Cin, N*H*W)
    x2d = jnp.transpose(x_nchw, (1, 0, 2, 3)).reshape(cin, rows)
    masks = _make_tap_masks(nb, h, w, p)                      # (9, P, r_blk)

    kernel = functools.partial(bottleneck_kernel, img_w=w)
    out2d = pl.pallas_call(
        kernel,
        out_shape=jax.ShapeDtypeStruct((cout, rows), x_nchw.dtype),
        grid_spec=pltpu.PrefetchScalarGridSpec(
            num_scalar_prefetch=0,
            grid=(n // nb,),
            in_specs=[
                pl.BlockSpec((cin, r_blk), lambda i: (0, i)),
                pl.BlockSpec(w1t.shape, lambda i: (0, 0)),
                pl.BlockSpec(w2t.shape, lambda i: (0, 0, 0)),
                pl.BlockSpec(w3t.shape, lambda i: (0, 0)),
                pl.BlockSpec(b1.shape, lambda i: (0, 0)),
                pl.BlockSpec(b2.shape, lambda i: (0, 0)),
                pl.BlockSpec(b3.shape, lambda i: (0, 0)),
                pl.BlockSpec(masks.shape, lambda i: (0, 0, 0)),
            ],
            out_specs=pl.BlockSpec((cout, r_blk), lambda i: (0, i)),
        ),
        compiler_params=pltpu.CompilerParams(
            dimension_semantics=("parallel",)),   # blocks are independent
    )(x2d, w1t, w2t, w3t, b1, b2, b3, masks)

    return jnp.transpose(out2d.reshape(cout, n, h, w), (1, 0, 2, 3))


if __name__ == "__main__":
    # Bottleneck(inplanes=16, planes=4, stride=1, downsample=None), eval-mode BN.
    N, inplanes, planes, expansion, H, W = 4, 16, 4, 4, 8, 8
    cout = planes * expansion
    key = jax.random.PRNGKey(0)
    ks = jax.random.split(key, 16)

    x_nchw = jax.random.normal(ks[0], (N, inplanes, H, W), jnp.float32)

    # conv weights in matmul-friendly layouts (PyTorch OIHW transposed)
    w1 = jax.random.normal(ks[1], (inplanes, planes), jnp.float32) * 0.1
    w2 = jax.random.normal(ks[2], (3, 3, planes, planes), jnp.float32) * 0.1   # HWIO
    w3 = jax.random.normal(ks[3], (planes, cout), jnp.float32) * 0.1

    def bn_fold(kg, kb, km, kv, c, eps=1e-5):
        gamma = jax.random.uniform(kg, (c,), jnp.float32, 0.5, 1.5)
        beta = jax.random.normal(kb, (c,), jnp.float32) * 0.1
        mean = jax.random.normal(km, (c,), jnp.float32) * 0.1
        var = jax.random.uniform(kv, (c,), jnp.float32, 0.5, 1.5)
        scale = gamma / jnp.sqrt(var + eps)
        return scale, beta - mean * scale

    s1, b1 = bn_fold(ks[4], ks[5], ks[6], ks[7], planes)
    s2, b2 = bn_fold(ks[8], ks[9], ks[10], ks[11], planes)
    s3, b3 = bn_fold(ks[12], ks[13], ks[14], ks[15], cout)

    params = fold_params(w1, w2, w3, s1, b1, s2, b2, s3, b3)
    out = jax.block_until_ready(bottleneck_forward(x_nchw, params))

    # Pure-JAX reference using the SAME bf16-rounded folded weights, so the only
    # remaining differences are in-kernel activation rounding / accumulation.
    w1t, w2t, w3t, _, _, _ = params
    w1_eff = w1t.astype(jnp.float32).T                                  # (Cin, P)
    w2_eff = jnp.transpose(
        w2t.astype(jnp.float32).reshape(3, 3, planes, planes), (0, 1, 3, 2))  # HWIO
    w3_eff = w3t.astype(jnp.float32).T                                  # (P, Cout)

    x_nhwc = jnp.transpose(x_nchw, (0, 2, 3, 1))
    y1 = jnp.maximum(jnp.einsum('nhwc,cp->nhwp', x_nhwc, w1_eff) + b1, 0.0)
    y2c = lax.conv_general_dilated(y1, w2_eff, (1, 1), 'SAME',
                                   dimension_numbers=('NHWC', 'HWIO', 'NHWC'))
    y2 = jnp.maximum(y2c + b2, 0.0)
    y3 = jnp.einsum('nhwp,pq->nhwq', y2, w3_eff) + b3
    ref = jnp.transpose(jnp.maximum(y3 + x_nhwc, 0.0), (0, 3, 1, 2))

    err = float(jnp.max(jnp.abs(out - ref)))
    assert out.shape == x_nchw.shape
    assert jnp.allclose(out, ref, atol=2e-2, rtol=2e-2), f"max abs err {err}"
    print("KERNEL_OK")
</pallas_src>

<mosaic_0001>
module attributes {stable_mosaic.version = 11 : i64} {
  func.func @bottleneck_kernel(%arg0: i32, %arg1: memref<16x128xf32, #tpu.memory_space<vmem>>, %arg2: memref<4x16xbf16, #tpu.memory_space<vmem>>, %arg3: memref<9x4x4xbf16, #tpu.memory_space<vmem>>, %arg4: memref<16x4xbf16, #tpu.memory_space<vmem>>, %arg5: memref<4x1xf32, #tpu.memory_space<vmem>>, %arg6: memref<4x1xf32, #tpu.memory_space<vmem>>, %arg7: memref<16x1xf32, #tpu.memory_space<vmem>>, %arg8: memref<9x4x128xf32, #tpu.memory_space<vmem>>, %arg9: memref<16x128xf32, #tpu.memory_space<vmem>>) attributes {dimension_semantics = [#tpu.dimension_semantics<parallel>], iteration_bounds = array<i64: 2>, scalar_prefetch = 0 : i64, scratch_operands = 0 : i64, tpu.core_type = #tpu.core_type<tc>, window_params = [{transform_indices = @transform_0, window_bounds = array<i64: 16, 128>}, {pipeline_mode = #tpu.pipeline_mode<synchronous>, transform_indices = @transform_1, window_bounds = array<i64: 4, 16>}, {pipeline_mode = #tpu.pipeline_mode<synchronous>, transform_indices = @transform_2, window_bounds = array<i64: 9, 4, 4>}, {pipeline_mode = #tpu.pipeline_mode<synchronous>, transform_indices = @transform_3, window_bounds = array<i64: 16, 4>}, {pipeline_mode = #tpu.pipeline_mode<synchronous>, transform_indices = @transform_4, window_bounds = array<i64: 4, 1>}, {pipeline_mode = #tpu.pipeline_mode<synchronous>, transform_indices = @transform_5, window_bounds = array<i64: 4, 1>}, {pipeline_mode = #tpu.pipeline_mode<synchronous>, transform_indices = @transform_6, window_bounds = array<i64: 16, 1>}, {pipeline_mode = #tpu.pipeline_mode<synchronous>, transform_indices = @transform_7, window_bounds = array<i64: 9, 4, 128>}, {transform_indices = @transform_8, window_bounds = array<i64: 16, 128>}]} {
    %c0 = arith.constant 0 : index
    %c0_0 = arith.constant 0 : index
    %0 = vector.load %arg1[%c0, %c0_0] : memref<16x128xf32, #tpu.memory_space<vmem>>, vector<16x128xf32>
    %c0_1 = arith.constant 0 : index
    %c0_2 = arith.constant 0 : index
    %1 = vector.load %arg2[%c0_1, %c0_2] : memref<4x16xbf16, #tpu.memory_space<vmem>>, vector<4x16xbf16>
    %2 = arith.truncf %0 : vector<16x128xf32> to vector<16x128xbf16>
    %cst = arith.constant dense<0.000000e+00> : vector<4x128xf32>
    %3 = tpu.matmul %1, %2, %cst {dimension_numbers = #tpu.dot_dimension_numbers<[1], [0], [0], [1], [0, 0, 1, 1], [], []>} : vector<4x16xbf16>, vector<16x128xbf16>, vector<4x128xf32> -> vector<4x128xf32>
    %c0_3 = arith.constant 0 : index
    %c0_4 = arith.constant 0 : index
    %4 = vector.load %arg5[%c0_3, %c0_4] : memref<4x1xf32, #tpu.memory_space<vmem>>, vector<4x1xf32>
    %5 = vector.broadcast %4 : vector<4x1xf32> to vector<4x128xf32>
    %6 = arith.addf %3, %5 : vector<4x128xf32>
    %cst_5 = arith.constant 0.000000e+00 : f32
    %7 = vector.broadcast %cst_5 : f32 to vector<4x128xf32>
    %8 = arith.maximumf %6, %7 : vector<4x128xf32>
    %cst_6 = arith.constant 0.000000e+00 : f32
    %9 = vector.broadcast %cst_6 : f32 to vector<4x128xf32>
    %10 = vector.extract_strided_slice %8 {offsets = [0, 119], sizes = [4, 9], strides = [1, 1]} : vector<4x128xf32> to vector<4x9xf32>
    %11 = vector.extract_strided_slice %8 {offsets = [0, 0], sizes = [4, 119], strides = [1, 1]} : vector<4x128xf32> to vector<4x119xf32>
    %12 = tpu.concatenate %10, %11 in 1 : vector<4x9xf32>, vector<4x119xf32> -> vector<4x128xf32>
    %c0_7 = arith.constant 0 : index
    %c0_8 = arith.constant 0 : index
    %c0_9 = arith.constant 0 : index
    %13 = vector.load %arg8[%c0_7, %c0_8, %c0_9] : memref<9x4x128xf32, #tpu.memory_space<vmem>>, vector<1x4x128xf32>
    %14 = vector.shape_cast %13 : vector<1x4x128xf32> to vector<4x128xf32>
    %15 = arith.mulf %12, %14 : vector<4x128xf32>
    %c0_10 = arith.constant 0 : index
    %c0_11 = arith.constant 0 : index
    %c0_12 = arith.constant 0 : index
    %16 = vector.load %arg3[%c0_10, %c0_11, %c0_12] : memref<9x4x4xbf16, #tpu.memory_space<vmem>>, vector<1x4x4xbf16>
    %17 = vector.shape_cast %16 : vector<1x4x4xbf16> to vector<4x4xbf16>
    %18 = arith.truncf %15 : vector<4x128xf32> to vector<4x128xbf16>
    %cst_13 = arith.constant dense<0.000000e+00> : vector<4x128xf32>
    %19 = tpu.matmul %17, %18, %cst_13 {dimension_numbers = #tpu.dot_dimension_numbers<[1], [0], [0], [1], [0, 0, 1, 1], [], []>} : vector<4x4xbf16>, vector<4x128xbf16>, vector<4x128xf32> -> vector<4x128xf32>
    %20 = arith.addf %9, %19 : vector<4x128xf32>
    %21 = vector.extract_strided_slice %8 {offsets = [0, 120], sizes = [4, 8], strides = [1, 1]} : vector<4x128xf32> to vector<4x8xf32>
    %22 = vector.extract_strided_slice %8 {offsets = [0, 0], sizes = [4, 120], strides = [1, 1]} : vector<4x128xf32> to vector<4x120xf32>
    %23 = tpu.concatenate %21, %22 in 1 : vector<4x8xf32>, vector<4x120xf32> -> vector<4x128xf32>
    %c1 = arith.constant 1 : index
    %c0_14 = arith.constant 0 : index
    %c0_15 = arith.constant 0 : index
    %24 = vector.load %arg8[%c1, %c0_14, %c0_15] : memref<9x4x128xf32, #tpu.memory_space<vmem>>, vector<1x4x128xf32>
    %25 = vector.shape_cast %24 : vector<1x4x128xf32> to vector<4x128xf32>
    %26 = arith.mulf %23, %25 : vector<4x128xf32>
    %c1_16 = arith.constant 1 : index
    %c0_17 = arith.constant 0 : index
    %c0_18 = arith.constant 0 : index
    %27 = vector.load %arg3[%c1_16, %c0_17, %c0_18] : memref<9x4x4xbf16, #tpu.memory_space<vmem>>, vector<1x4x4xbf16>
    %28 = vector.shape_cast %27 : vector<1x4x4xbf16> to vector<4x4xbf16>
    %29 = arith.truncf %26 : vector<4x128xf32> to vector<4x128xbf16>
    %cst_19 = arith.constant dense<0.000000e+00> : vector<4x128xf32>
    %30 = tpu.matmul %28, %29, %cst_19 {dimension_numbers = #tpu.dot_dimension_numbers<[1], [0], [0], [1], [0, 0, 1, 1], [], []>} : vector<4x4xbf16>, vector<4x128xbf16>, vector<4x128xf32> -> vector<4x128xf32>
    %31 = arith.addf %20, %30 : vector<4x128xf32>
    %32 = vector.extract_strided_slice %8 {offsets = [0, 121], sizes = [4, 7], strides = [1, 1]} : vector<4x128xf32> to vector<4x7xf32>
    %33 = vector.extract_strided_slice %8 {offsets = [0, 0], sizes = [4, 121], strides = [1, 1]} : vector<4x128xf32> to vector<4x121xf32>
    %34 = tpu.concatenate %32, %33 in 1 : vector<4x7xf32>, vector<4x121xf32> -> vector<4x128xf32>
    %c2 = arith.constant 2 : index
    %c0_20 = arith.constant 0 : index
    %c0_21 = arith.constant 0 : index
    %35 = vector.load %arg8[%c2, %c0_20, %c0_21] : memref<9x4x128xf32, #tpu.memory_space<vmem>>, vector<1x4x128xf32>
    %36 = vector.shape_cast %35 : vector<1x4x128xf32> to vector<4x128xf32>
    %37 = arith.mulf %34, %36 : vector<4x128xf32>
    %c2_22 = arith.constant 2 : index
    %c0_23 = arith.constant 0 : index
    %c0_24 = arith.constant 0 : index
    %38 = vector.load %arg3[%c2_22, %c0_23, %c0_24] : memref<9x4x4xbf16, #tpu.memory_space<vmem>>, vector<1x4x4xbf16>
    %39 = vector.shape_cast %38 : vector<1x4x4xbf16> to vector<4x4xbf16>
    %40 = arith.truncf %37 : vector<4x128xf32> to vector<4x128xbf16>
    %cst_25 = arith.constant dense<0.000000e+00> : vector<4x128xf32>
    %41 = tpu.matmul %39, %40, %cst_25 {dimension_numbers = #tpu.dot_dimension_numbers<[1], [0], [0], [1], [0, 0, 1, 1], [], []>} : vector<4x4xbf16>, vector<4x128xbf16>, vector<4x128xf32> -> vector<4x128xf32>
    %42 = arith.addf %31, %41 : vector<4x128xf32>
    %43 = vector.extract_strided_slice %8 {offsets = [0, 127], sizes = [4, 1], strides = [1, 1]} : vector<4x128xf32> to vector<4x1xf32>
    %44 = vector.extract_strided_slice %8 {offsets = [0, 0], sizes = [4, 127], strides = [1, 1]} : vector<4x128xf32> to vector<4x127xf32>
    %45 = tpu.concatenate %43, %44 in 1 : vector<4x1xf32>, vector<4x127xf32> -> vector<4x128xf32>
    %c3 = arith.constant 3 : index
    %c0_26 = arith.constant 0 : index
    %c0_27 = arith.constant 0 : index
    %46 = vector.load %arg8[%c3, %c0_26, %c0_27] : memref<9x4x128xf32, #tpu.memory_space<vmem>>, vector<1x4x128xf32>
    %47 = vector.shape_cast %46 : vector<1x4x128xf32> to vector<4x128xf32>
    %48 = arith.mulf %45, %47 : vector<4x128xf32>
    %c3_28 = arith.constant 3 : index
    %c0_29 = arith.constant 0 : index
    %c0_30 = arith.constant 0 : index
    %49 = vector.load %arg3[%c3_28, %c0_29, %c0_30] : memref<9x4x4xbf16, #tpu.memory_space<vmem>>, vector<1x4x4xbf16>
    %50 = vector.shape_cast %49 : vector<1x4x4xbf16> to vector<4x4xbf16>
    %51 = arith.truncf %48 : vector<4x128xf32> to vector<4x128xbf16>
    %cst_31 = arith.constant dense<0.000000e+00> : vector<4x128xf32>
    %52 = tpu.matmul %50, %51, %cst_31 {dimension_numbers = #tpu.dot_dimension_numbers<[1], [0], [0], [1], [0, 0, 1, 1], [], []>} : vector<4x4xbf16>, vector<4x128xbf16>, vector<4x128xf32> -> vector<4x128xf32>
    %53 = arith.addf %42, %52 : vector<4x128xf32>
    %c4 = arith.constant 4 : index
    %c0_32 = arith.constant 0 : index
    %c0_33 = arith.constant 0 : index
    %54 = vector.load %arg3[%c4, %c0_32, %c0_33] : memref<9x4x4xbf16, #tpu.memory_space<vmem>>, vector<1x4x4xbf16>
    %55 = vector.shape_cast %54 : vector<1x4x4xbf16> to vector<4x4xbf16>
    %56 = arith.truncf %8 : vector<4x128xf32> to vector<4x128xbf16>
    %cst_34 = arith.constant dense<0.000000e+00> : vector<4x128xf32>
    %57 = tpu.matmul %55, %56, %cst_34 {dimension_numbers = #tpu.dot_dimension_numbers<[1], [0], [0], [1], [0, 0, 1, 1], [], []>} : vector<4x4xbf16>, vector<4x128xbf16>, vector<4x128xf32> -> vector<4x128xf32>
    %58 = arith.addf %53, %57 : vector<4x128xf32>
    %59 = vector.extract_strided_slice %8 {offsets = [0, 1], sizes = [4, 127], strides = [1, 1]} : vector<4x128xf32> to vector<4x127xf32>
    %60 = vector.extract_strided_slice %8 {offsets = [0, 0], sizes = [4, 1], strides = [1, 1]} : vector<4x128xf32> to vector<4x1xf32>
    %61 = tpu.concatenate %59, %60 in 1 : vector<4x127xf32>, vector<4x1xf32> -> vector<4x128xf32>
    %c5 = arith.constant 5 : index
    %c0_35 = arith.constant 0 : index
    %c0_36 = arith.constant 0 : index
    %62 = vector.load %arg8[%c5, %c0_35, %c0_36] : memref<9x4x128xf32, #tpu.memory_space<vmem>>, vector<1x4x128xf32>
    %63 = vector.shape_cast %62 : vector<1x4x128xf32> to vector<4x128xf32>
    %64 = arith.mulf %61, %63 : vector<4x128xf32>
    %c5_37 = arith.constant 5 : index
    %c0_38 = arith.constant 0 : index
    %c0_39 = arith.constant 0 : index
    %65 = vector.load %arg3[%c5_37, %c0_38, %c0_39] : memref<9x4x4xbf16, #tpu.memory_space<vmem>>, vector<1x4x4xbf16>
    %66 = vector.shape_cast %65 : vector<1x4x4xbf16> to vector<4x4xbf16>
    %67 = arith.truncf %64 : vector<4x128xf32> to vector<4x128xbf16>
    %cst_40 = arith.constant dense<0.000000e+00> : vector<4x128xf32>
    %68 = tpu.matmul %66, %67, %cst_40 {dimension_numbers = #tpu.dot_dimension_numbers<[1], [0], [0], [1], [0, 0, 1, 1], [], []>} : vector<4x4xbf16>, vector<4x128xbf16>, vector<4x128xf32> -> vector<4x128xf32>
    %69 = arith.addf %58, %68 : vector<4x128xf32>
    %70 = vector.extract_strided_slice %8 {offsets = [0, 7], sizes = [4, 121], strides = [1, 1]} : vector<4x128xf32> to vector<4x121xf32>
    %71 = vector.extract_strided_slice %8 {offsets = [0, 0], sizes = [4, 7], strides = [1, 1]} : vector<4x128xf32> to vector<4x7xf32>
    %72 = tpu.concatenate %70, %71 in 1 : vector<4x121xf32>, vector<4x7xf32> -> vector<4x128xf32>
    %c6 = arith.constant 6 : index
    %c0_41 = arith.constant 0 : index
    %c0_42 = arith.constant 0 : index
    %73 = vector.load %arg8[%c6, %c0_41, %c0_42] : memref<9x4x128xf32, #tpu.memory_space<vmem>>, vector<1x4x128xf32>
    %74 = vector.shape_cast %73 : vector<1x4x128xf32> to vector<4x128xf32>
    %75 = arith.mulf %72, %74 : vector<4x128xf32>
    %c6_43 = arith.constant 6 : index
    %c0_44 = arith.constant 0 : index
    %c0_45 = arith.constant 0 : index
    %76 = vector.load %arg3[%c6_43, %c0_44, %c0_45] : memref<9x4x4xbf16, #tpu.memory_space<vmem>>, vector<1x4x4xbf16>
    %77 = vector.shape_cast %76 : vector<1x4x4xbf16> to vector<4x4xbf16>
    %78 = arith.truncf %75 : vector<4x128xf32> to vector<4x128xbf16>
    %cst_46 = arith.constant dense<0.000000e+00> : vector<4x128xf32>
    %79 = tpu.matmul %77, %78, %cst_46 {dimension_numbers = #tpu.dot_dimension_numbers<[1], [0], [0], [1], [0, 0, 1, 1], [], []>} : vector<4x4xbf16>, vector<4x128xbf16>, vector<4x128xf32> -> vector<4x128xf32>
    %80 = arith.addf %69, %79 : vector<4x128xf32>
    %81 = vector.extract_strided_slice %8 {offsets = [0, 8], sizes = [4, 120], strides = [1, 1]} : vector<4x128xf32> to vector<4x120xf32>
    %82 = vector.extract_strided_slice %8 {offsets = [0, 0], sizes = [4, 8], strides = [1, 1]} : vector<4x128xf32> to vector<4x8xf32>
    %83 = tpu.concatenate %81, %82 in 1 : vector<4x120xf32>, vector<4x8xf32> -> vector<4x128xf32>
    %c7 = arith.constant 7 : index
    %c0_47 = arith.constant 0 : index
    %c0_48 = arith.constant 0 : index
    %84 = vector.load %arg8[%c7, %c0_47, %c0_48] : memref<9x4x128xf32, #tpu.memory_space<vmem>>, vector<1x4x128xf32>
    %85 = vector.shape_cast %84 : vector<1x4x128xf32> to vector<4x128xf32>
    %86 = arith.mulf %83, %85 : vector<4x128xf32>
    %c7_49 = arith.constant 7 : index
    %c0_50 = arith.constant 0 : index
    %c0_51 = arith.constant 0 : index
    %87 = vector.load %arg3[%c7_49, %c0_50, %c0_51] : memref<9x4x4xbf16, #tpu.memory_space<vmem>>, vector<1x4x4xbf16>
    %88 = vector.shape_cast %87 : vector<1x4x4xbf16> to vector<4x4xbf16>
    %89 = arith.truncf %86 : vector<4x128xf32> to vector<4x128xbf16>
    %cst_52 = arith.constant dense<0.000000e+00> : vector<4x128xf32>
    %90 = tpu.matmul %88, %89, %cst_52 {dimension_numbers = #tpu.dot_dimension_numbers<[1], [0], [0], [1], [0, 0, 1, 1], [], []>} : vector<4x4xbf16>, vector<4x128xbf16>, vector<4x128xf32> -> vector<4x128xf32>
    %91 = arith.addf %80, %90 : vector<4x128xf32>
    %92 = vector.extract_strided_slice %8 {offsets = [0, 9], sizes = [4, 119], strides = [1, 1]} : vector<4x128xf32> to vector<4x119xf32>
    %93 = vector.extract_strided_slice %8 {offsets = [0, 0], sizes = [4, 9], strides = [1, 1]} : vector<4x128xf32> to vector<4x9xf32>
    %94 = tpu.concatenate %92, %93 in 1 : vector<4x119xf32>, vector<4x9xf32> -> vector<4x128xf32>
    %c8 = arith.constant 8 : index
    %c0_53 = arith.constant 0 : index
    %c0_54 = arith.constant 0 : index
    %95 = vector.load %arg8[%c8, %c0_53, %c0_54] : memref<9x4x128xf32, #tpu.memory_space<vmem>>, vector<1x4x128xf32>
    %96 = vector.shape_cast %95 : vector<1x4x128xf32> to vector<4x128xf32>
    %97 = arith.mulf %94, %96 : vector<4x128xf32>
    %c8_55 = arith.constant 8 : index
    %c0_56 = arith.constant 0 : index
    %c0_57 = arith.constant 0 : index
    %98 = vector.load %arg3[%c8_55, %c0_56, %c0_57] : memref<9x4x4xbf16, #tpu.memory_space<vmem>>, vector<1x4x4xbf16>
    %99 = vector.shape_cast %98 : vector<1x4x4xbf16> to vector<4x4xbf16>
    %100 = arith.truncf %97 : vector<4x128xf32> to vector<4x128xbf16>
    %cst_58 = arith.constant dense<0.000000e+00> : vector<4x128xf32>
    %101 = tpu.matmul %99, %100, %cst_58 {dimension_numbers = #tpu.dot_dimension_numbers<[1], [0], [0], [1], [0, 0, 1, 1], [], []>} : vector<4x4xbf16>, vector<4x128xbf16>, vector<4x128xf32> -> vector<4x128xf32>
    %102 = arith.addf %91, %101 : vector<4x128xf32>
    %c0_59 = arith.constant 0 : index
    %c0_60 = arith.constant 0 : index
    %103 = vector.load %arg6[%c0_59, %c0_60] : memref<4x1xf32, #tpu.memory_space<vmem>>, vector<4x1xf32>
    %104 = vector.broadcast %103 : vector<4x1xf32> to vector<4x128xf32>
    %105 = arith.addf %102, %104 : vector<4x128xf32>
    %cst_61 = arith.constant 0.000000e+00 : f32
    %106 = vector.broadcast %cst_61 : f32 to vector<4x128xf32>
    %107 = arith.maximumf %105, %106 : vector<4x128xf32>
    %c0_62 = arith.constant 0 : index
    %c0_63 = arith.constant 0 : index
    %108 = vector.load %arg4[%c0_62, %c0_63] : memref<16x4xbf16, #tpu.memory_space<vmem>>, vector<16x4xbf16>
    %109 = arith.truncf %107 : vector<4x128xf32> to vector<4x128xbf16>
    %cst_64 = arith.constant dense<0.000000e+00> : vector<16x128xf32>
    %110 = tpu.matmul %108, %109, %cst_64 {dimension_numbers = #tpu.dot_dimension_numbers<[1], [0], [0], [1], [0, 0, 1, 1], [], []>} : vector<16x4xbf16>, vector<4x128xbf16>, vector<16x128xf32> -> vector<16x128xf32>
    %c0_65 = arith.constant 0 : index
    %c0_66 = arith.constant 0 : index
    %111 = vector.load %arg7[%c0_65, %c0_66] : memref<16x1xf32, #tpu.memory_space<vmem>>, vector<16x1xf32>
    %112 = vector.broadcast %111 : vector<16x1xf32> to vector<16x128xf32>
    %113 = arith.addf %110, %112 : vector<16x128xf32>
    %114 = arith.addf %113, %0 : vector<16x128xf32>
    %cst_67 = arith.constant 0.000000e+00 : f32
    %115 = vector.broadcast %cst_67 : f32 to vector<16x128xf32>
    %116 = arith.maximumf %114, %115 : vector<16x128xf32>
    %c0_68 = arith.constant 0 : index
    %c0_69 = arith.constant 0 : index
    %117 = vector.load %arg9[%c0_68, %c0_69] : memref<16x128xf32, #tpu.memory_space<vmem>>, vector<16x128xf32>
    tpu.vector_store %arg9[%c0_68, %c0_69], %116 {strides = array<i32>} : memref<16x128xf32, #tpu.memory_space<vmem>>, vector<16x128xf32>,
    return
  }
  func.func @transform_0(%arg0: i32) -> (i32, i32) {
    %c0_i32 = arith.constant 0 : i32
    %c0_i32_0 = arith.constant 0 : i32
    return %c0_i32, %arg0 : i32, i32
  }
  func.func @transform_1(%arg0: i32) -> (i32, i32) {
    %c0_i32 = arith.constant 0 : i32
    %c0_i32_0 = arith.constant 0 : i32
    %c0_i32_1 = arith.constant 0 : i32
    return %c0_i32, %c0_i32_0 : i32, i32
  }
  func.func @transform_2(%arg0: i32) -> (i32, i32, i32) {
    %c0_i32 = arith.constant 0 : i32
    %c0_i32_0 = arith.constant 0 : i32
    %c0_i32_1 = arith.constant 0 : i32
    %c0_i32_2 = arith.constant 0 : i32
    return %c0_i32, %c0_i32_0, %c0_i32_1 : i32, i32, i32
  }
  func.func @transform_3(%arg0: i32) -> (i32, i32) {
    %c0_i32 = arith.constant 0 : i32
    %c0_i32_0 = arith.constant 0 : i32
    %c0_i32_1 = arith.constant 0 : i32
    return %c0_i32, %c0_i32_0 : i32, i32
  }
  func.func @transform_4(%arg0: i32) -> (i32, i32) {
    %c0_i32 = arith.constant 0 : i32
    %c0_i32_0 = arith.constant 0 : i32
    %c0_i32_1 = arith.constant 0 : i32
    return %c0_i32, %c0_i32_0 : i32, i32
  }
  func.func @transform_5(%arg0: i32) -> (i32, i32) {
    %c0_i32 = arith.constant 0 : i32
    %c0_i32_0 = arith.constant 0 : i32
    %c0_i32_1 = arith.constant 0 : i32
    return %c0_i32, %c0_i32_0 : i32, i32
  }
  func.func @transform_6(%arg0: i32) -> (i32, i32) {
    %c0_i32 = arith.constant 0 : i32
    %c0_i32_0 = arith.constant 0 : i32
    %c0_i32_1 = arith.constant 0 : i32
    return %c0_i32, %c0_i32_0 : i32, i32
  }
  func.func @transform_7(%arg0: i32) -> (i32, i32, i32) {
    %c0_i32 = arith.constant 0 : i32
    %c0_i32_0 = arith.constant 0 : i32
    %c0_i32_1 = arith.constant 0 : i32
    %c0_i32_2 = arith.constant 0 : i32
    return %c0_i32, %c0_i32_0, %c0_i32_1 : i32, i32, i32
  }
  func.func @transform_8(%arg0: i32) -> (i32, i32) {
    %c0_i32 = arith.constant 0 : i32
    %c0_i32_0 = arith.constant 0 : i32
    return %c0_i32, %arg0 : i32, i32
  }
}

</mosaic_0001>

<llo_original>
// kernel: tpu_custom_call.1
$region0: #{tpu_custom_call.1}
  #allocation0 [shape = 'u32[]', space=smem, size = 0x4, offset = 0x4, fixed_abs, tag = 'smem constant byte address 0x4 - core index']
  #allocation1 [shape = 'u32[144,128]{1,0:T(1,128)}', space=vmem, size = 0x12000, scoped, tag = 'internal scratch']
  %s0 = inlined_call_operand.vmem [shape: f32[16,256], index: 0, kind: input, shape index: {}]
  %s1 = inlined_call_operand.vmem [shape: bf16[4,16], index: 1, kind: input, shape index: {}]
  %s2 = inlined_call_operand.vmem [shape: bf16[9,4,4], index: 2, kind: input, shape index: {}]
  %s3 = inlined_call_operand.vmem [shape: bf16[16,4], index: 3, kind: input, shape index: {}]
  %s4 = inlined_call_operand.vmem [shape: f32[4,1], index: 4, kind: input, shape index: {}]
  %s5 = inlined_call_operand.vmem [shape: f32[4,1], index: 5, kind: input, shape index: {}]
  %s6 = inlined_call_operand.vmem [shape: f32[16,1], index: 6, kind: input, shape index: {}]
  %s7 = inlined_call_operand.vmem [shape: f32[9,4,128], index: 7, kind: input, shape index: {}]
  %s8 = inlined_call_operand.hbm [shape: f32[16,256], index: 8, kind: output, shape index: {}]
  %s9 = sld [smem:[#allocation0]]
  $region103: #{tpu_custom_call.1} parent=0
    _
  %s11 = ssub.s32 1, %s9
  %s12 = scalar_select 0, %s11, %s9
  $region1: #{tpu_custom_call.1} parent=0
    #allocation2 [shape = 'u8[16384]{0}', space=vmem, size = 0x4000, scoped, tag = 'input window, operand 0']
    #allocation3 [shape = 'u8[16384]{0}', space=vmem, size = 0x4000, scoped, tag = 'output window, operand 0']
    #allocation4 [shape = 's32[2]{0}', space=sflag, size = 0x8, scoped, tag = 'scoped memory for tpu_custom_call.1']
    %13 = vsyncpa [#allocation4], 0
    %s14 = scalar_lea.sflag [#allocation4], 1
    %15 = vsyncpa %s14, 0
    loop: start=0, step=1, limit=4
    $region2: #{tpu_custom_call.1} parent=1 // loop_pre_header
      _
    $region3: #{tpu_custom_call.1} parent=1 // loop_header
      %s17 = sphi 0, %s21
      %p18 = scmp.ge.s32.totalorder %s17, 4
      %s27 = sphi 0, %s29
      %s30 = sphi 0, %s27
      %s31 = sphi 0, %s30
      %s47 = sphi 0, %s31
      %s51 = sphi 0, %s51
      %s53 = sphi 0, %s51
      %s54 = sphi 0, %s53
      %s68 = sphi 0, %s54
      %s72 = sphi 0, %s72
      %s74 = sphi 0, %s72
      %s75 = sphi 0, %s74
      %s89 = sphi 0, %s75
      %s93 = sphi 0, %s93
      %s95 = sphi 0, %s93
      %s96 = sphi 0, %s95
      %s110 = sphi 0, %s96
      %s114 = sphi 0, %s114
      %s116 = sphi 0, %s114
      %s117 = sphi 0, %s116
      %s131 = sphi 0, %s117
      %s135 = sphi 0, %s135
      %s137 = sphi 0, %s135
      %s138 = sphi 0, %s137
      %s152 = sphi 0, %s138
      %s156 = sphi 0, %s156
      %s158 = sphi 0, %s156
      %s159 = sphi 0, %s158
      %s173 = sphi 0, %s159
      %s177 = sphi 0, %s177
      %s179 = sphi 0, %s177
      %s180 = sphi 0, %s179
      %s194 = sphi 0, %s180
      %s200 = sphi 0, %s202
      %s203 = sphi 0, %s200
      %s204 = sphi 0, %s203
      %s220 = sphi 0, %s204
    $region4: #{tpu_custom_call.1} parent=1 // loop_header_branch
      %20 = sbr.rel (%p18) target = $region8
    $region5: #{tpu_custom_call.1} parent=1 // loop_body
      %s22 = ssub.s32 %s17, 1
      %s23 = ssub.s32 %s17, 2
      %s24 = sadd.s32 %s17, 1
      %s25 = ssub.s32 %s17, %s24
      %p26 = scmp.eq.s32.totalorder %s25, 0
      %s28 = sadd.s32 %s27, 1
      %s29 = scalar_select %p26, %s27, %s28
      %p32 = pneg %p26
      %p33 = scmp.eq.s32.totalorder %s17, 1
      %p34 = por %p32, %p33
      %p35 = scmp.ne.s32.totalorder %s27, %s30
      %p36 = scmp.eq.s32.totalorder %s17, 0
      %p37 = por %p35, %p36
      %p38 = scmp.ne.s32.totalorder %s27, %s30
      %p39 = scmp.eq.s32.totalorder %s22, 1
      %p40 = por %p38, %p39
      %p41 = scmp.ne.s32.totalorder %s30, %s31
      %p42 = scmp.eq.s32.totalorder %s22, 0
      %p43 = por %p41, %p42
      %p44 = scmp.ne.s32.totalorder %s30, %s31
      %p45 = scmp.eq.s32.totalorder %s23, 1
      %p46 = por %p44, %p45
      %p48 = scmp.ne.s32.totalorder %s31, %s47
      %p49 = scmp.eq.s32.totalorder %s23, 0
      %p50 = por %p48, %p49
      %s52 = sadd.s32 %s51, 1
      %p55 = scmp.eq.s32.totalorder %s17, 1
      %p56 = scmp.ne.s32.totalorder %s51, %s53
      %p57 = scmp.eq.s32.totalorder %s17, 0
      %p58 = por %p56, %p57
      %p59 = scmp.ne.s32.totalorder %s51, %s53
      %p60 = scmp.eq.s32.totalorder %s22, 1
      %p61 = por %p59, %p60
      %p62 = scmp.ne.s32.totalorder %s53, %s54
      %p63 = scmp.eq.s32.totalorder %s22, 0
      %p64 = por %p62, %p63
      %p65 = scmp.ne.s32.totalorder %s53, %s54
      %p66 = scmp.eq.s32.totalorder %s23, 1
      %p67 = por %p65, %p66
      %p69 = scmp.ne.s32.totalorder %s54, %s68
      %p70 = scmp.eq.s32.totalorder %s23, 0
      %p71 = por %p69, %p70
      %s73 = sadd.s32 %s72, 1
      %p76 = scmp.eq.s32.totalorder %s17, 1
      %p77 = scmp.ne.s32.totalorder %s72, %s74
      %p78 = scmp.eq.s32.totalorder %s17, 0
      %p79 = por %p77, %p78
      %p80 = scmp.ne.s32.totalorder %s72, %s74
      %p81 = scmp.eq.s32.totalorder %s22, 1
      %p82 = por %p80, %p81
      %p83 = scmp.ne.s32.totalorder %s74, %s75
      %p84 = scmp.eq.s32.totalorder %s22, 0
      %p85 = por %p83, %p84
      %p86 = scmp.ne.s32.totalorder %s74, %s75
      %p87 = scmp.eq.s32.totalorder %s23, 1
      %p88 = por %p86, %p87
      %p90 = scmp.ne.s32.totalorder %s75, %s89
      %p91 = scmp.eq.s32.totalorder %s23, 0
      %p92 = por %p90, %p91
      %s94 = sadd.s32 %s93, 1
      %p97 = scmp.eq.s32.totalorder %s17, 1
      %p98 = scmp.ne.s32.totalorder %s93, %s95
      %p99 = scmp.eq.s32.totalorder %s17, 0
      %p100 = por %p98, %p99
      %p101 = scmp.ne.s32.totalorder %s93, %s95
      %p102 = scmp.eq.s32.totalorder %s22, 1
      %p103 = por %p101, %p102
      %p104 = scmp.ne.s32.totalorder %s95, %s96
      %p105 = scmp.eq.s32.totalorder %s22, 0
      %p106 = por %p104, %p105
      %p107 = scmp.ne.s32.totalorder %s95, %s96
      %p108 = scmp.eq.s32.totalorder %s23, 1
      %p109 = por %p107, %p108
      %p111 = scmp.ne.s32.totalorder %s96, %s110
      %p112 = scmp.eq.s32.totalorder %s23, 0
      %p113 = por %p111, %p112
      %s115 = sadd.s32 %s114, 1
      %p118 = scmp.eq.s32.totalorder %s17, 1
      %p119 = scmp.ne.s32.totalorder %s114, %s116
      %p120 = scmp.eq.s32.totalorder %s17, 0
      %p121 = por %p119, %p120
      %p122 = scmp.ne.s32.totalorder %s114, %s116
      %p123 = scmp.eq.s32.totalorder %s22, 1
      %p124 = por %p122, %p123
      %p125 = scmp.ne.s32.totalorder %s116, %s117
      %p126 = scmp.eq.s32.totalorder %s22, 0
      %p127 = por %p125, %p126
      %p128 = scmp.ne.s32.totalorder %s116, %s117
      %p129 = scmp.eq.s32.totalorder %s23, 1
      %p130 = por %p128, %p129
      %p132 = scmp.ne.s32.totalorder %s117, %s131
      %p133 = scmp.eq.s32.totalorder %s23, 0
      %p134 = por %p132, %p133
      %s136 = sadd.s32 %s135, 1
      %p139 = scmp.eq.s32.totalorder %s17, 1
      %p140 = scmp.ne.s32.totalorder %s135, %s137
      %p141 = scmp.eq.s32.totalorder %s17, 0
      %p142 = por %p140, %p141
      %p143 = scmp.ne.s32.totalorder %s135, %s137
      %p144 = scmp.eq.s32.totalorder %s22, 1
      %p145 = por %p143, %p144
      %p146 = scmp.ne.s32.totalorder %s137, %s138
      %p147 = scmp.eq.s32.totalorder %s22, 0
      %p148 = por %p146, %p147
      %p149 = scmp.ne.s32.totalorder %s137, %s138
      %p150 = scmp.eq.s32.totalorder %s23, 1
      %p151 = por %p149, %p150
      %p153 = scmp.ne.s32.totalorder %s138, %s152
      %p154 = scmp.eq.s32.totalorder %s23, 0
      %p155 = por %p153, %p154
      %s157 = sadd.s32 %s156, 1
      %p160 = scmp.eq.s32.totalorder %s17, 1
      %p161 = scmp.ne.s32.totalorder %s156, %s158
      %p162 = scmp.eq.s32.totalorder %s17, 0
      %p163 = por %p161, %p162
      %p164 = scmp.ne.s32.totalorder %s156, %s158
      %p165 = scmp.eq.s32.totalorder %s22, 1
      %p166 = por %p164, %p165
      %p167 = scmp.ne.s32.totalorder %s158, %s159
      %p168 = scmp.eq.s32.totalorder %s22, 0
      %p169 = por %p167, %p168
      %p170 = scmp.ne.s32.totalorder %s158, %s159
      %p171 = scmp.eq.s32.totalorder %s23, 1
      %p172 = por %p170, %p171
      %p174 = scmp.ne.s32.totalorder %s159, %s173
      %p175 = scmp.eq.s32.totalorder %s23, 0
      %p176 = por %p174, %p175
      %s178 = sadd.s32 %s177, 1
      %p181 = scmp.eq.s32.totalorder %s17, 1
      %p182 = scmp.ne.s32.totalorder %s177, %s179
      %p183 = scmp.eq.s32.totalorder %s17, 0
      %p184 = por %p182, %p183
      %p185 = scmp.ne.s32.totalorder %s177, %s179
      %p186 = scmp.eq.s32.totalorder %s22, 1
      %p187 = por %p185, %p186
      %p188 = scmp.ne.s32.totalorder %s179, %s180
      %p189 = scmp.eq.s32.totalorder %s22, 0
      %p190 = por %p188, %p189
      %p191 = scmp.ne.s32.totalorder %s179, %s180
      %p192 = scmp.eq.s32.totalorder %s23, 1
      %p193 = por %p191, %p192
      %p195 = scmp.ne.s32.totalorder %s180, %s194
      %p196 = scmp.eq.s32.totalorder %s23, 0
      %p197 = por %p195, %p196
      %s198 = ssub.s32 %s17, %s24
      %p199 = scmp.eq.s32.totalorder %s198, 0
      %s201 = sadd.s32 %s200, 1
      %s202 = scalar_select %p199, %s200, %s201
      %p205 = pneg %p199
      %p206 = scmp.eq.s32.totalorder %s17, 1
      %p207 = por %p205, %p206
      %p208 = scmp.ne.s32.totalorder %s200, %s203
      %p209 = scmp.eq.s32.totalorder %s17, 0
      %p210 = por %p208, %p209
      %p211 = scmp.ne.s32.totalorder %s200, %s203
      %p212 = scmp.eq.s32.totalorder %s22, 1
      %p213 = por %p211, %p212
      %p214 = scmp.ne.s32.totalorder %s203, %s204
      %p215 = scmp.eq.s32.totalorder %s22, 0
      %p216 = por %p214, %p215
      %p217 = scmp.ne.s32.totalorder %s203, %s204
      %p218 = scmp.eq.s32.totalorder %s23, 1
      %p219 = por %p217, %p218
      %p221 = scmp.ne.s32.totalorder %s204, %s220
      %p222 = scmp.eq.s32.totalorder %s23, 0
      %p223 = por %p221, %p222
      %p224 = scmp.le.s32.totalorder 1, %s17
      %p225 = scmp.lt.s32.totalorder %s17, 3
      %p226 = pnand %p224, %p225
      %p227 = pneg %p226
      // Predicated region
      $region9: #{tpu_custom_call.1} parent=5 // pred_check
        _
      $region10: #{tpu_custom_call.1} parent=5 // pred_check_branch
        %229 = sbr.rel (%p226) target = $region12
      $region11: #{tpu_custom_call.1} parent=5 // pred_region
        %s230 = ssub.s32 %s17, 1
        // Predicated region
        $region13: #{tpu_custom_call.1} parent=11 // pred_check
          %p231 = pneg %p64
        $region14: #{tpu_custom_call.1} parent=11 // pred_check_branch
          %233 = sbr.rel (%p231) target = $region16
        $region15: #{tpu_custom_call.1} parent=11 // pred_region
          _
        $region16: #{tpu_custom_call.1} parent=11 // pred_fallthru
          _
        // Predicated region
        $region17: #{tpu_custom_call.1} parent=11 // pred_check
          %p234 = pneg %p85
        $region18: #{tpu_custom_call.1} parent=11 // pred_check_branch
          %236 = sbr.rel (%p234) target = $region20
        $region19: #{tpu_custom_call.1} parent=11 // pred_region
          _
        $region20: #{tpu_custom_call.1} parent=11 // pred_fallthru
          _
        // Predicated region
        $region21: #{tpu_custom_call.1} parent=11 // pred_check
          %p237 = pneg %p106
        $region22: #{tpu_custom_call.1} parent=11 // pred_check_branch
          %239 = sbr.rel (%p237) target = $region24
        $region23: #{tpu_custom_call.1} parent=11 // pred_region
          _
        $region24: #{tpu_custom_call.1} parent=11 // pred_fallthru
          _
        // Predicated region
        $region25: #{tpu_custom_call.1} parent=11 // pred_check
          %p240 = pneg %p127
        $region26: #{tpu_custom_call.1} parent=11 // pred_check_branch
          %242 = sbr.rel (%p240) target = $region28
        $region27: #{tpu_custom_call.1} parent=11 // pred_region
          _
        $region28: #{tpu_custom_call.1} parent=11 // pred_fallthru
          _
        // Predicated region
        $region29: #{tpu_custom_call.1} parent=11 // pred_check
          %p243 = pneg %p148
        $region30: #{tpu_custom_call.1} parent=11 // pred_check_branch
          %245 = sbr.rel (%p243) target = $region32
        $region31: #{tpu_custom_call.1} parent=11 // pred_region
          _
        $region32: #{tpu_custom_call.1} parent=11 // pred_fallthru
          _
        // Predicated region
        $region33: #{tpu_custom_call.1} parent=11 // pred_check
          %p246 = pneg %p169
        $region34: #{tpu_custom_call.1} parent=11 // pred_check_branch
          %248 = sbr.rel (%p246) target = $region36
        $region35: #{tpu_custom_call.1} parent=11 // pred_region
          _
        $region36: #{tpu_custom_call.1} parent=11 // pred_fallthru
          _
        // Predicated region
        $region37: #{tpu_custom_call.1} parent=11 // pred_check
          %p249 = pneg %p190
        $region38: #{tpu_custom_call.1} parent=11 // pred_check_branch
          %251 = sbr.rel (%p249) target = $region40
        $region39: #{tpu_custom_call.1} parent=11 // pred_region
          _
        $region40: #{tpu_custom_call.1} parent=11 // pred_fallthru
          _
      $region12: #{tpu_custom_call.1} parent=5 // pred_fallthru
        _
      %p252 = scmp.lt.s32.totalorder %s17, 2
      // Predicated region
      $region41: #{tpu_custom_call.1} parent=5 // pred_check
        %p253 = pneg %p252
      $region42: #{tpu_custom_call.1} parent=5 // pred_check_branch
        %255 = sbr.rel (%p253) target = $region44
      $region43: #{tpu_custom_call.1} parent=5 // pred_region
        // Predicated region
        $region45: #{tpu_custom_call.1} parent=43 // pred_check
          %p256 = pneg %p37
        $region46: #{tpu_custom_call.1} parent=43 // pred_check_branch
          %258 = sbr.rel (%p256) target = $region48
        $region47: #{tpu_custom_call.1} parent=43 // pred_region
          %s259 = sand.u32 %s27, 1
          %s260 = sand.u32 %s27, 1
          %s261 = smul.addr %s260, 16
          %s262 = scalar_lea.vmem [#allocation2], %s261
          %s263 = smul.addr %s17, 8
          %s264 = scalar_lea.vmem %s0, %s263
          // Predicated region
          $region49: #{tpu_custom_call.1} parent=47 // pred_check
            _
          $region50: #{tpu_custom_call.1} parent=47 // pred_check_branch
            %266 = sbr.rel (0) target = $region52
          $region51: #{tpu_custom_call.1} parent=47 // pred_region
            // Predicated region
            $region53: #{tpu_custom_call.1} parent=51 // pred_check
              _
            $region54: #{tpu_custom_call.1} parent=51 // pred_check_branch
              %268 = sbr.rel (0) target = $region56
            $region55: #{tpu_custom_call.1} parent=51 // pred_region
              // Predicated region
              $region68: #{tpu_custom_call.1} parent=55 // pred_check
                _
              $region69: #{tpu_custom_call.1} parent=55 // pred_check_branch
                %285 = sbr.rel (0) target = $region71
              $region70: #{tpu_custom_call.1} parent=55 // pred_region
                loop: start=0, step=1, limit=1
                $region72: #{tpu_custom_call.1} parent=70 // loop_pre_header
                  _
                $region73: #{tpu_custom_call.1} parent=70 // loop_header
                  %s287 = sphi 0, %s291
                  %p288 = scmp.ge.s32.totalorder %s287, 1
                  %s292 = sphi %s264, %s264
                  %s293 = sphi %s262, %s262
                $region74: #{tpu_custom_call.1} parent=70 // loop_header_branch
                  %290 = sbr.rel (%p288) target = $region78
                $region75: #{tpu_custom_call.1} parent=70 // loop_body
                  %v294 = vld [vmem:[%s292] sm:$0xff]
                  %295 = vst [vmem:[%s293] sm:$0xff] %v294
                  %v296 = vld [vmem:[%s292 + $0x10] sm:$0xff]
                  %297 = vst [vmem:[%s293 + $0x8] sm:$0xff] %v296
                $region76: #{tpu_custom_call.1} parent=70 // loop_footer
                  %s291 = sadd.s32 1, %s287
                $region77: #{tpu_custom_call.1} parent=70 // loop_footer_branch
                  %286 = sbr.rel target = $region73
                $region78: #{tpu_custom_call.1} parent=70 // loop_exit
                  _
              $region71: #{tpu_custom_call.1} parent=55 // pred_fallthru
                _
              // Predicated region
              $region79: #{tpu_custom_call.1} parent=55 // pred_check
                _
              $region80: #{tpu_custom_call.1} parent=55 // pred_check_branch
                %299 = sbr.rel target = $region82
              $region81: #{tpu_custom_call.1} parent=55 // pred_region
                _
              $region82: #{tpu_custom_call.1} parent=55 // pred_fallthru
                _
            $region56: #{tpu_custom_call.1} parent=51 // pred_fallthru
              _
            // Predicated region
            $region57: #{tpu_custom_call.1} parent=51 // pred_check
              _
            $region58: #{tpu_custom_call.1} parent=51 // pred_check_branch
              %270 = sbr.rel target = $region60
            $region59: #{tpu_custom_call.1} parent=51 // pred_region
              loop: start=0, step=1, limit=1
              $region61: #{tpu_custom_call.1} parent=59 // loop_pre_header
                _
              $region62: #{tpu_custom_call.1} parent=59 // loop_header
                %s273 = sphi 0, %s277
                %p274 = scmp.ge.s32.totalorder %s273, 1
                %s278 = sphi %s264, %s264
                %s279 = sphi %s262, %s262
              $region63: #{tpu_custom_call.1} parent=59 // loop_header_branch
                %276 = sbr.rel (%p274) target = $region67
              $region64: #{tpu_custom_call.1} parent=59 // loop_body
                %v280 = vld [vmem:[%s278] sm:$0xff]
                %281 = vst [vmem:[%s279] sm:$0xff] %v280
                %v282 = vld [vmem:[%s278 + $0x10] sm:$0xff]
                %283 = vst [vmem:[%s279 + $0x8] sm:$0xff] %v282
              $region65: #{tpu_custom_call.1} parent=59 // loop_footer
                %s277 = sadd.s32 1, %s273
              $region66: #{tpu_custom_call.1} parent=59 // loop_footer_branch
                %272 = sbr.rel target = $region62
              $region67: #{tpu_custom_call.1} parent=59 // loop_exit
                _
            $region60: #{tpu_custom_call.1} parent=51 // pred_fallthru
              _
          $region52: #{tpu_custom_call.1} parent=47 // pred_fallthru
            _
          %300 = vnop
        $region48: #{tpu_custom_call.1} parent=43 // pred_fallthru
          _
      $region44: #{tpu_custom_call.1} parent=5 // pred_fallthru
        _
      %p301 = scmp.le.s32.totalorder 1, %s17
      %p302 = scmp.lt.s32.totalorder %s17, 3
      %p303 = pnand %p301, %p302
      %p304 = pneg %p303
      // Predicated region
      $region83: #{tpu_custom_call.1} parent=5 // pred_check
        _
      $region84: #{tpu_custom_call.1} parent=5 // pred_check_branch
        %306 = sbr.rel (%p303) target = $region86
      $region85: #{tpu_custom_call.1} parent=5 // pred_region
        %s307 = ssub.s32 %s17, 1
        %s308 = sand.u32 %s30, 1
        %s309 = sand.u32 %s30, 1
        %s310 = smul.addr %s309, 16
        %s311 = scalar_lea.vmem [#allocation2], %s310
        // Predicated region
        $region87: #{tpu_custom_call.1} parent=85 // pred_check
          %p312 = pneg %p43
        $region88: #{tpu_custom_call.1} parent=85 // pred_check_branch
          %314 = sbr.rel (%p312) target = $region90
        $region89: #{tpu_custom_call.1} parent=85 // pred_region
          _
        $region90: #{tpu_custom_call.1} parent=85 // pred_fallthru
          _
        %s315 = sand.u32 %s30, 1
        %s316 = sand.u32 %s30, 1
        %s317 = smul.addr %s316, 16
        %s318 = scalar_lea.vmem [#allocation2], %s317
        %p319 = pneg %p43
        %p320 = pneg %p40
        %p321 = pneg %p64
        %p322 = pneg %p61
        %p323 = pneg %p85
        %p324 = pneg %p82
        %p325 = pneg %p106
        %p326 = pneg %p103
        %p327 = pneg %p127
        %p328 = pneg %p124
        %p329 = pneg %p148
        %p330 = pneg %p145
        %p331 = pneg %p169
        %p332 = pneg %p166
        %p333 = pneg %p190
        %p334 = pneg %p187
        %p335 = pneg %p216
        %p336 = pneg %p213
        %s337 = sand.u32 %s203, 1
        %s338 = scalar_lea.sflag [#allocation4], %s337
        %s339 = sand.u32 %s203, 1
        %s340 = smul.addr %s339, 16
        %s341 = scalar_lea.vmem [#allocation3], %s340
        %v343 = vld [vmem:[%s311] sm:$0xff]
        %v344 = vld [vmem:[%s311 + $0x8] sm:$0xff]
        %v345 = vld [vmem:[%s1] sm:$0x3]
        %v346 = vpack.c.bf16 %v344, %v343
        %v347 = vld [vmem:[%s4] sm:$0xf]
        %349 = vset.pattern.permute.xlu0 0
        %350 = vperm.xlu0 %349, %v347
        %v351 = vpop.permute.xlu0 %350
        %vm353 = vcmask 130048
        %v355 = vsel %vm353, %v345, 0
        %357 = vmatprep.subr.bf16.mxu0 0
        %358 = vmatpush1.bf16.msra.mxu0 %v346
        %359 = vmatprep.subr.bf16.mxu0 0
        %360 = vmatpush1.bf16.msra.mxu0 0
        %361 = vmatprep.subr.bf16.mxu0 0
        %362 = vmatpush1.bf16.msra.mxu0 0
        %363 = vmatprep.subr.bf16.mxu0 0
        %364 = vmatpush1.bf16.msra.mxu0 0
        %365 = vmatprep.subr.bf16.mxu0 0
        %366 = vmatpush1.bf16.msra.mxu0 0
        %367 = vmatprep.subr.bf16.mxu0 0
        %368 = vmatpush1.bf16.msra.mxu0 0
        %369 = vmatprep.subr.bf16.mxu0 0
        %370 = vmatpush1.bf16.msra.mxu0 0
        %371 = vmatprep.subr.bf16.mxu0 0
        %372 = vmatpush1.bf16.msra.mxu0 0
        %373 = vmatprep.subr.bf16.mxu0 0
        %374 = vmatpush1.bf16.msra.mxu0 0
        %375 = vmatprep.subr.bf16.mxu0 0
        %376 = vmatpush1.bf16.msra.mxu0 0
        %377 = vmatprep.subr.bf16.mxu0 0
        %378 = vmatpush1.bf16.msra.mxu0 0
        %379 = vmatprep.subr.bf16.mxu0 0
        %380 = vmatpush1.bf16.msra.mxu0 0
        %381 = vmatprep.subr.bf16.mxu0 0
        %382 = vmatpush1.bf16.msra.mxu0 0
        %383 = vmatprep.subr.bf16.mxu0 0
        %384 = vmatpush1.bf16.msra.mxu0 0
        %385 = vmatprep.subr.bf16.mxu0 0
        %386 = vmatpush1.bf16.msra.mxu0 0
        %387 = vmatprep.subr.bf16.mxu0 0
        %388 = vmatpush1.bf16.msra.mxu0 0
        %389 = vmatprep.mubr.bf16.mxu0 0
        %390 = vmatmul.mubr.bf16.gmra.mrb[0].mxu0 %v355
        %v391 = vpop.f32.mrb[0].mxu0
        %v392 = vadd.f32 %v351, %v391
        %v393 = vpop.f32.mrb[0].mxu0
        %v394 = vpop.f32.mrb[0].mxu0
        %v395 = vpop.f32.mrb[0].mxu0
        %396 = vdwg.mxu0
        %v397 = vmax.f32 %v392, 0.0
        %399 = vrot.lane.b32.xlu0 %v397, 9
        %v400 = vpop.permute.xlu0 %399
        %v402 = vld [vmem:[%s7] sm:$0xf]
        %v403 = vmul.f32 %v400, %v402
        %v404 = vld [vmem:[%s2] sm:$0x3]
        %v405 = vpack.c.bf16 %v403, %v403
        %406 = vrot.lane.b32.xlu0 %v397, 8
        %v407 = vpop.permute.xlu0 %406
        %s409 = scalar_lea.vmem %s7, 4
        %v410 = vld [vmem:[%s409] sm:$0xf]
        %v411 = vmul.f32 %v407, %v410
        %s412 = scalar_lea.vmem %s2, 2
        %v413 = vld [vmem:[%s412] sm:$0x3]
        %v414 = vpack.c.bf16 %v411, %v411
        %vm415 = vcmask 31744
        %v417 = vsel %vm415, %v413, 0
        %vm419 = vcmask 1041408
        %v421 = vsel %vm419, %v414, 0
        %423 = vmatprep.subr.bf16.mxu0 0
        %424 = vmatpush1.bf16.msra.mxu0 %v421
        %425 = vmatprep.subr.bf16.mxu0 0
        %426 = vmatpush1.bf16.msra.mxu0 0
        %427 = vmatprep.subr.bf16.mxu0 0
        %428 = vmatpush1.bf16.msra.mxu0 0
        %429 = vmatprep.subr.bf16.mxu0 0
        %430 = vmatpush1.bf16.msra.mxu0 0
        %431 = vmatprep.subr.bf16.mxu0 0
        %432 = vmatpush1.bf16.msra.mxu0 0
        %433 = vmatprep.subr.bf16.mxu0 0
        %434 = vmatpush1.bf16.msra.mxu0 0
        %435 = vmatprep.subr.bf16.mxu0 0
        %436 = vmatpush1.bf16.msra.mxu0 0
        %437 = vmatprep.subr.bf16.mxu0 0
        %438 = vmatpush1.bf16.msra.mxu0 0
        %439 = vmatprep.subr.bf16.mxu0 0
        %440 = vmatpush1.bf16.msra.mxu0 0
        %441 = vmatprep.subr.bf16.mxu0 0
        %442 = vmatpush1.bf16.msra.mxu0 0
        %443 = vmatprep.subr.bf16.mxu0 0
        %444 = vmatpush1.bf16.msra.mxu0 0
        %445 = vmatprep.subr.bf16.mxu0 0
        %446 = vmatpush1.bf16.msra.mxu0 0
        %447 = vmatprep.subr.bf16.mxu0 0
        %448 = vmatpush1.bf16.msra.mxu0 0
        %449 = vmatprep.subr.bf16.mxu0 0
        %450 = vmatpush1.bf16.msra.mxu0 0
        %451 = vmatprep.subr.bf16.mxu0 0
        %452 = vmatpush1.bf16.msra.mxu0 0
        %453 = vmatprep.subr.bf16.mxu0 0
        %454 = vmatpush1.bf16.msra.mxu0 0
        %455 = vmatprep.mubr.bf16.mxu0 0
        %456 = vmatmul.mubr.bf16.gmra.mrb[0].mxu0 %v417
        %v457 = vpop.f32.mrb[0].mxu0
        %v458 = vadd.f32 0.0, %v457
        %v459 = vpop.f32.mrb[0].mxu0
        %v460 = vpop.f32.mrb[0].mxu0
        %v461 = vpop.f32.mrb[0].mxu0
        %462 = vdwg.mxu0
        %v464 = vsel %vm415, %v404, 0
        %v467 = vsel %vm419, %v405, 0
        %469 = vmatprep.subr.bf16.mxu0 0
        %470 = vmatpush1.bf16.msra.mxu0 %v467
        %471 = vmatprep.subr.bf16.mxu0 0
        %472 = vmatpush1.bf16.msra.mxu0 0
        %473 = vmatprep.subr.bf16.mxu0 0
        %474 = vmatpush1.bf16.msra.mxu0 0
        %475 = vmatprep.subr.bf16.mxu0 0
        %476 = vmatpush1.bf16.msra.mxu0 0
        %477 = vmatprep.subr.bf16.mxu0 0
        %478 = vmatpush1.bf16.msra.mxu0 0
        %479 = vmatprep.subr.bf16.mxu0 0
        %480 = vmatpush1.bf16.msra.mxu0 0
        %481 = vmatprep.subr.bf16.mxu0 0
        %482 = vmatpush1.bf16.msra.mxu0 0
        %483 = vmatprep.subr.bf16.mxu0 0
        %484 = vmatpush1.bf16.msra.mxu0 0
        %485 = vmatprep.subr.bf16.mxu0 0
        %486 = vmatpush1.bf16.msra.mxu0 0
        %487 = vmatprep.subr.bf16.mxu0 0
        %488 = vmatpush1.bf16.msra.mxu0 0
        %489 = vmatprep.subr.bf16.mxu0 0
        %490 = vmatpush1.bf16.msra.mxu0 0
        %491 = vmatprep.subr.bf16.mxu0 0
        %492 = vmatpush1.bf16.msra.mxu0 0
        %493 = vmatprep.subr.bf16.mxu0 0
        %494 = vmatpush1.bf16.msra.mxu0 0
        %495 = vmatprep.subr.bf16.mxu0 0
        %496 = vmatpush1.bf16.msra.mxu0 0
        %497 = vmatprep.subr.bf16.mxu0 0
        %498 = vmatpush1.bf16.msra.mxu0 0
        %499 = vmatprep.subr.bf16.mxu0 0
        %500 = vmatpush1.bf16.msra.mxu0 0
        %501 = vmatprep.mubr.bf16.mxu0 0
        %502 = vmatmul.mubr.bf16.gmra.mrb[0].mxu0 %v464
        %v503 = vpop.f32.mrb[0].mxu0
        %v504 = vadd.f32 %v458, %v503
        %v505 = vpop.f32.mrb[0].mxu0
        %v506 = vpop.f32.mrb[0].mxu0
        %v507 = vpop.f32.mrb[0].mxu0
        %508 = vdwg.mxu0
        %509 = vrot.lane.b32.xlu0 %v397, 7
        %v510 = vpop.permute.xlu0 %509
        %s512 = scalar_lea.vmem %s7, 8
        %v513 = vld [vmem:[%s512] sm:$0xf]
        %v514 = vmul.f32 %v510, %v513
        %s515 = scalar_lea.vmem %s2, 4
        %v516 = vld [vmem:[%s515] sm:$0x3]
        %v517 = vpack.c.bf16 %v514, %v514
        %v519 = vsel %vm415, %v516, 0
        %v522 = vsel %vm419, %v517, 0
        %524 = vmatprep.subr.bf16.mxu0 0
        %525 = vmatpush1.bf16.msra.mxu0 %v522
        %526 = vmatprep.subr.bf16.mxu0 0
        %527 = vmatpush1.bf16.msra.mxu0 0
        %528 = vmatprep.subr.bf16.mxu0 0
        %529 = vmatpush1.bf16.msra.mxu0 0
        %530 = vmatprep.subr.bf16.mxu0 0
        %531 = vmatpush1.bf16.msra.mxu0 0
        %532 = vmatprep.subr.bf16.mxu0 0
        %533 = vmatpush1.bf16.msra.mxu0 0
        %534 = vmatprep.subr.bf16.mxu0 0
        %535 = vmatpush1.bf16.msra.mxu0 0
        %536 = vmatprep.subr.bf16.mxu0 0
        %537 = vmatpush1.bf16.msra.mxu0 0
        %538 = vmatprep.subr.bf16.mxu0 0
        %539 = vmatpush1.bf16.msra.mxu0 0
        %540 = vmatprep.subr.bf16.mxu0 0
        %541 = vmatpush1.bf16.msra.mxu0 0
        %542 = vmatprep.subr.bf16.mxu0 0
        %543 = vmatpush1.bf16.msra.mxu0 0
        %544 = vmatprep.subr.bf16.mxu0 0
        %545 = vmatpush1.bf16.msra.mxu0 0
        %546 = vmatprep.subr.bf16.mxu0 0
        %547 = vmatpush1.bf16.msra.mxu0 0
        %548 = vmatprep.subr.bf16.mxu0 0
        %549 = vmatpush1.bf16.msra.mxu0 0
        %550 = vmatprep.subr.bf16.mxu0 0
        %551 = vmatpush1.bf16.msra.mxu0 0
        %552 = vmatprep.subr.bf16.mxu0 0
        %553 = vmatpush1.bf16.msra.mxu0 0
        %554 = vmatprep.subr.bf16.mxu0 0
        %555 = vmatpush1.bf16.msra.mxu0 0
        %556 = vmatprep.mubr.bf16.mxu0 0
        %557 = vmatmul.mubr.bf16.gmra.mrb[0].mxu0 %v519
        %v558 = vpop.f32.mrb[0].mxu0
        %v559 = vadd.f32 0.0, %v558
        %v560 = vpop.f32.mrb[0].mxu0
        %v561 = vpop.f32.mrb[0].mxu0
        %v562 = vpop.f32.mrb[0].mxu0
        %563 = vdwg.mxu0
        %v564 = vadd.f32 %v504, %v559
        %565 = vrot.lane.b32.xlu0 %v397, 1
        %v566 = vpop.permute.xlu0 %565
        %s568 = scalar_lea.vmem %s7, 12
        %v569 = vld [vmem:[%s568] sm:$0xf]
        %v570 = vmul.f32 %v566, %v569
        %s571 = scalar_lea.vmem %s2, 6
        %v572 = vld [vmem:[%s571] sm:$0x3]
        %v573 = vpack.c.bf16 %v570, %v570
        %v575 = vsel %vm415, %v572, 0
        %v578 = vsel %vm419, %v573, 0
        %580 = vmatprep.subr.bf16.mxu0 0
        %581 = vmatpush1.bf16.msra.mxu0 %v578
        %582 = vmatprep.subr.bf16.mxu0 0
        %583 = vmatpush1.bf16.msra.mxu0 0
        %584 = vmatprep.subr.bf16.mxu0 0
        %585 = vmatpush1.bf16.msra.mxu0 0
        %586 = vmatprep.subr.bf16.mxu0 0
        %587 = vmatpush1.bf16.msra.mxu0 0
        %588 = vmatprep.subr.bf16.mxu0 0
        %589 = vmatpush1.bf16.msra.mxu0 0
        %590 = vmatprep.subr.bf16.mxu0 0
        %591 = vmatpush1.bf16.msra.mxu0 0
        %592 = vmatprep.subr.bf16.mxu0 0
        %593 = vmatpush1.bf16.msra.mxu0 0
        %594 = vmatprep.subr.bf16.mxu0 0
        %595 = vmatpush1.bf16.msra.mxu0 0
        %596 = vmatprep.subr.bf16.mxu0 0
        %597 = vmatpush1.bf16.msra.mxu0 0
        %598 = vmatprep.subr.bf16.mxu0 0
        %599 = vmatpush1.bf16.msra.mxu0 0
        %600 = vmatprep.subr.bf16.mxu0 0
        %601 = vmatpush1.bf16.msra.mxu0 0
        %602 = vmatprep.subr.bf16.mxu0 0
        %603 = vmatpush1.bf16.msra.mxu0 0
        %604 = vmatprep.subr.bf16.mxu0 0
        %605 = vmatpush1.bf16.msra.mxu0 0
        %606 = vmatprep.subr.bf16.mxu0 0
        %607 = vmatpush1.bf16.msra.mxu0 0
        %608 = vmatprep.subr.bf16.mxu0 0
        %609 = vmatpush1.bf16.msra.mxu0 0
        %610 = vmatprep.subr.bf16.mxu0 0
        %611 = vmatpush1.bf16.msra.mxu0 0
        %612 = vmatprep.mubr.bf16.mxu0 0
        %613 = vmatmul.mubr.bf16.gmra.mrb[0].mxu0 %v575
        %v614 = vpop.f32.mrb[0].mxu0
        %v615 = vadd.f32 0.0, %v614
        %v616 = vpop.f32.mrb[0].mxu0
        %v617 = vpop.f32.mrb[0].mxu0
        %v618 = vpop.f32.mrb[0].mxu0
        %619 = vdwg.mxu0
        %v620 = vadd.f32 %v564, %v615
        %s621 = scalar_lea.vmem %s2, 8
        %v622 = vld [vmem:[%s621] sm:$0x3]
        %v623 = vpack.c.bf16 %v397, %v397
        %v625 = vsel %vm415, %v622, 0
        %v628 = vsel %vm419, %v623, 0
        %630 = vmatprep.subr.bf16.mxu0 0
        %631 = vmatpush1.bf16.msra.mxu0 %v628
        %632 = vmatprep.subr.bf16.mxu0 0
        %633 = vmatpush1.bf16.msra.mxu0 0
        %634 = vmatprep.subr.bf16.mxu0 0
        %635 = vmatpush1.bf16.msra.mxu0 0
        %636 = vmatprep.subr.bf16.mxu0 0
        %637 = vmatpush1.bf16.msra.mxu0 0
        %638 = vmatprep.subr.bf16.mxu0 0
        %639 = vmatpush1.bf16.msra.mxu0 0
        %640 = vmatprep.subr.bf16.mxu0 0
        %641 = vmatpush1.bf16.msra.mxu0 0
        %642 = vmatprep.subr.bf16.mxu0 0
        %643 = vmatpush1.bf16.msra.mxu0 0
        %644 = vmatprep.subr.bf16.mxu0 0
        %645 = vmatpush1.bf16.msra.mxu0 0
        %646 = vmatprep.subr.bf16.mxu0 0
        %647 = vmatpush1.bf16.msra.mxu0 0
        %648 = vmatprep.subr.bf16.mxu0 0
        %649 = vmatpush1.bf16.msra.mxu0 0
        %650 = vmatprep.subr.bf16.mxu0 0
        %651 = vmatpush1.bf16.msra.mxu0 0
        %652 = vmatprep.subr.bf16.mxu0 0
        %653 = vmatpush1.bf16.msra.mxu0 0
        %654 = vmatprep.subr.bf16.mxu0 0
        %655 = vmatpush1.bf16.msra.mxu0 0
        %656 = vmatprep.subr.bf16.mxu0 0
        %657 = vmatpush1.bf16.msra.mxu0 0
        %658 = vmatprep.subr.bf16.mxu0 0
        %659 = vmatpush1.bf16.msra.mxu0 0
        %660 = vmatprep.subr.bf16.mxu0 0
        %661 = vmatpush1.bf16.msra.mxu0 0
        %662 = vmatprep.mubr.bf16.mxu0 0
        %663 = vmatmul.mubr.bf16.gmra.mrb[0].mxu0 %v625
        %v664 = vpop.f32.mrb[0].mxu0
        %v665 = vadd.f32 0.0, %v664
        %v666 = vpop.f32.mrb[0].mxu0
        %v667 = vpop.f32.mrb[0].mxu0
        %v668 = vpop.f32.mrb[0].mxu0
        %669 = vdwg.mxu0
        %v670 = vadd.f32 %v620, %v665
        %671 = vrot.lane.b32.xlu0 %v397, 127
        %v672 = vpop.permute.xlu0 %671
        %s674 = scalar_lea.vmem %s7, 20
        %v675 = vld [vmem:[%s674] sm:$0xf]
        %v676 = vmul.f32 %v672, %v675
        %s677 = scalar_lea.vmem %s2, 10
        %v678 = vld [vmem:[%s677] sm:$0x3]
        %v679 = vpack.c.bf16 %v676, %v676
        %v681 = vsel %vm415, %v678, 0
        %v684 = vsel %vm419, %v679, 0
        %686 = vmatprep.subr.bf16.mxu0 0
        %687 = vmatpush1.bf16.msra.mxu0 %v684
        %688 = vmatprep.subr.bf16.mxu0 0
        %689 = vmatpush1.bf16.msra.mxu0 0
        %690 = vmatprep.subr.bf16.mxu0 0
        %691 = vmatpush1.bf16.msra.mxu0 0
        %692 = vmatprep.subr.bf16.mxu0 0
        %693 = vmatpush1.bf16.msra.mxu0 0
        %694 = vmatprep.subr.bf16.mxu0 0
        %695 = vmatpush1.bf16.msra.mxu0 0
        %696 = vmatprep.subr.bf16.mxu0 0
        %697 = vmatpush1.bf16.msra.mxu0 0
        %698 = vmatprep.subr.bf16.mxu0 0
        %699 = vmatpush1.bf16.msra.mxu0 0
        %700 = vmatprep.subr.bf16.mxu0 0
        %701 = vmatpush1.bf16.msra.mxu0 0
        %702 = vmatprep.subr.bf16.mxu0 0
        %703 = vmatpush1.bf16.msra.mxu0 0
        %704 = vmatprep.subr.bf16.mxu0 0
        %705 = vmatpush1.bf16.msra.mxu0 0
        %706 = vmatprep.subr.bf16.mxu0 0
        %707 = vmatpush1.bf16.msra.mxu0 0
        %708 = vmatprep.subr.bf16.mxu0 0
        %709 = vmatpush1.bf16.msra.mxu0 0
        %710 = vmatprep.subr.bf16.mxu0 0
        %711 = vmatpush1.bf16.msra.mxu0 0
        %712 = vmatprep.subr.bf16.mxu0 0
        %713 = vmatpush1.bf16.msra.mxu0 0
        %714 = vmatprep.subr.bf16.mxu0 0
        %715 = vmatpush1.bf16.msra.mxu0 0
        %716 = vmatprep.subr.bf16.mxu0 0
        %717 = vmatpush1.bf16.msra.mxu0 0
        %718 = vmatprep.mubr.bf16.mxu0 0
        %719 = vmatmul.mubr.bf16.gmra.mrb[0].mxu0 %v681
        %v720 = vpop.f32.mrb[0].mxu0
        %v721 = vadd.f32 0.0, %v720
        %v722 = vpop.f32.mrb[0].mxu0
        %v723 = vpop.f32.mrb[0].mxu0
        %v724 = vpop.f32.mrb[0].mxu0
        %725 = vdwg.mxu0
        %v726 = vadd.f32 %v670, %v721
        %727 = vrot.lane.b32.xlu0 %v397, 121
        %v728 = vpop.permute.xlu0 %727
        %s730 = scalar_lea.vmem %s7, 24
        %v731 = vld [vmem:[%s730] sm:$0xf]
        %v732 = vmul.f32 %v728, %v731
        %s733 = scalar_lea.vmem %s2, 12
        %v734 = vld [vmem:[%s733] sm:$0x3]
        %v735 = vpack.c.bf16 %v732, %v732
        %v737 = vsel %vm415, %v734, 0
        %v740 = vsel %vm419, %v735, 0
        %742 = vmatprep.subr.bf16.mxu0 0
        %743 = vmatpush1.bf16.msra.mxu0 %v740
        %744 = vmatprep.subr.bf16.mxu0 0
        %745 = vmatpush1.bf16.msra.mxu0 0
        %746 = vmatprep.subr.bf16.mxu0 0
        %747 = vmatpush1.bf16.msra.mxu0 0
        %748 = vmatprep.subr.bf16.mxu0 0
        %749 = vmatpush1.bf16.msra.mxu0 0
        %750 = vmatprep.subr.bf16.mxu0 0
        %751 = vmatpush1.bf16.msra.mxu0 0
        %752 = vmatprep.subr.bf16.mxu0 0
        %753 = vmatpush1.bf16.msra.mxu0 0
        %754 = vmatprep.subr.bf16.mxu0 0
        %755 = vmatpush1.bf16.msra.mxu0 0
        %756 = vmatprep.subr.bf16.mxu0 0
        %757 = vmatpush1.bf16.msra.mxu0 0
        %758 = vmatprep.subr.bf16.mxu0 0
        %759 = vmatpush1.bf16.msra.mxu0 0
        %760 = vmatprep.subr.bf16.mxu0 0
        %761 = vmatpush1.bf16.msra.mxu0 0
        %762 = vmatprep.subr.bf16.mxu0 0
        %763 = vmatpush1.bf16.msra.mxu0 0
        %764 = vmatprep.subr.bf16.mxu0 0
        %765 = vmatpush1.bf16.msra.mxu0 0
        %766 = vmatprep.subr.bf16.mxu0 0
        %767 = vmatpush1.bf16.msra.mxu0 0
        %768 = vmatprep.subr.bf16.mxu0 0
        %769 = vmatpush1.bf16.msra.mxu0 0
        %770 = vmatprep.subr.bf16.mxu0 0
        %771 = vmatpush1.bf16.msra.mxu0 0
        %772 = vmatprep.subr.bf16.mxu0 0
        %773 = vmatpush1.bf16.msra.mxu0 0
        %774 = vmatprep.mubr.bf16.mxu0 0
        %775 = vmatmul.mubr.bf16.gmra.mrb[0].mxu0 %v737
        %v776 = vpop.f32.mrb[0].mxu0
        %v777 = vadd.f32 0.0, %v776
        %v778 = vpop.f32.mrb[0].mxu0
        %v779 = vpop.f32.mrb[0].mxu0
        %v780 = vpop.f32.mrb[0].mxu0
        %781 = vdwg.mxu0
        %v782 = vadd.f32 %v726, %v777
        %783 = vrot.lane.b32.xlu0 %v397, 120
        %v784 = vpop.permute.xlu0 %783
        %s786 = scalar_lea.vmem %s7, 28
        %v787 = vld [vmem:[%s786] sm:$0xf]
        %v788 = vmul.f32 %v784, %v787
        %s789 = scalar_lea.vmem %s2, 14
        %v790 = vld [vmem:[%s789] sm:$0x3]
        %v791 = vpack.c.bf16 %v788, %v788
        %v793 = vsel %vm415, %v790, 0
        %v796 = vsel %vm419, %v791, 0
        %798 = vmatprep.subr.bf16.mxu0 0
        %799 = vmatpush1.bf16.msra.mxu0 %v796
        %800 = vmatprep.subr.bf16.mxu0 0
        %801 = vmatpush1.bf16.msra.mxu0 0
        %802 = vmatprep.subr.bf16.mxu0 0
        %803 = vmatpush1.bf16.msra.mxu0 0
        %804 = vmatprep.subr.bf16.mxu0 0
        %805 = vmatpush1.bf16.msra.mxu0 0
        %806 = vmatprep.subr.bf16.mxu0 0
        %807 = vmatpush1.bf16.msra.mxu0 0
        %808 = vmatprep.subr.bf16.mxu0 0
        %809 = vmatpush1.bf16.msra.mxu0 0
        %810 = vmatprep.subr.bf16.mxu0 0
        %811 = vmatpush1.bf16.msra.mxu0 0
        %812 = vmatprep.subr.bf16.mxu0 0
        %813 = vmatpush1.bf16.msra.mxu0 0
        %814 = vmatprep.subr.bf16.mxu0 0
        %815 = vmatpush1.bf16.msra.mxu0 0
        %816 = vmatprep.subr.bf16.mxu0 0
        %817 = vmatpush1.bf16.msra.mxu0 0
        %818 = vmatprep.subr.bf16.mxu0 0
        %819 = vmatpush1.bf16.msra.mxu0 0
        %820 = vmatprep.subr.bf16.mxu0 0
        %821 = vmatpush1.bf16.msra.mxu0 0
        %822 = vmatprep.subr.bf16.mxu0 0
        %823 = vmatpush1.bf16.msra.mxu0 0
        %824 = vmatprep.subr.bf16.mxu0 0
        %825 = vmatpush1.bf16.msra.mxu0 0
        %826 = vmatprep.subr.bf16.mxu0 0
        %827 = vmatpush1.bf16.msra.mxu0 0
        %828 = vmatprep.subr.bf16.mxu0 0
        %829 = vmatpush1.bf16.msra.mxu0 0
        %830 = vmatprep.mubr.bf16.mxu0 0
        %831 = vmatmul.mubr.bf16.gmra.mrb[0].mxu0 %v793
        %v832 = vpop.f32.mrb[0].mxu0
        %v833 = vadd.f32 0.0, %v832
        %v834 = vpop.f32.mrb[0].mxu0
        %v835 = vpop.f32.mrb[0].mxu0
        %v836 = vpop.f32.mrb[0].mxu0
        %837 = vdwg.mxu0
        %v838 = vadd.f32 %v782, %v833
        %839 = vrot.lane.b32.xlu0 %v397, 119
        %v840 = vpop.permute.xlu0 %839
        %s842 = scalar_lea.vmem %s7, 32
        %v843 = vld [vmem:[%s842] sm:$0xf]
        %v844 = vmul.f32 %v840, %v843
        %s845 = scalar_lea.vmem %s2, 16
        %v846 = vld [vmem:[%s845] sm:$0x3]
        %v847 = vpack.c.bf16 %v844, %v844
        %v849 = vsel %vm415, %v846, 0
        %v852 = vsel %vm419, %v847, 0
        %854 = vmatprep.subr.bf16.mxu0 0
        %855 = vmatpush1.bf16.msra.mxu0 %v852
        %856 = vmatprep.subr.bf16.mxu0 0
        %857 = vmatpush1.bf16.msra.mxu0 0
        %858 = vmatprep.subr.bf16.mxu0 0
        %859 = vmatpush1.bf16.msra.mxu0 0
        %860 = vmatprep.subr.bf16.mxu0 0
        %861 = vmatpush1.bf16.msra.mxu0 0
        %862 = vmatprep.subr.bf16.mxu0 0
        %863 = vmatpush1.bf16.msra.mxu0 0
        %864 = vmatprep.subr.bf16.mxu0 0
        %865 = vmatpush1.bf16.msra.mxu0 0
        %866 = vmatprep.subr.bf16.mxu0 0
        %867 = vmatpush1.bf16.msra.mxu0 0
        %868 = vmatprep.subr.bf16.mxu0 0
        %869 = vmatpush1.bf16.msra.mxu0 0
        %870 = vmatprep.subr.bf16.mxu0 0
        %871 = vmatpush1.bf16.msra.mxu0 0
        %872 = vmatprep.subr.bf16.mxu0 0
        %873 = vmatpush1.bf16.msra.mxu0 0
        %874 = vmatprep.subr.bf16.mxu0 0
        %875 = vmatpush1.bf16.msra.mxu0 0
        %876 = vmatprep.subr.bf16.mxu0 0
        %877 = vmatpush1.bf16.msra.mxu0 0
        %878 = vmatprep.subr.bf16.mxu0 0
        %879 = vmatpush1.bf16.msra.mxu0 0
        %880 = vmatprep.subr.bf16.mxu0 0
        %881 = vmatpush1.bf16.msra.mxu0 0
        %882 = vmatprep.subr.bf16.mxu0 0
        %883 = vmatpush1.bf16.msra.mxu0 0
        %884 = vmatprep.subr.bf16.mxu0 0
        %885 = vmatpush1.bf16.msra.mxu0 0
        %886 = vmatprep.mubr.bf16.mxu0 0
        %887 = vmatmul.mubr.bf16.gmra.mrb[0].mxu0 %v849
        %v888 = vpop.f32.mrb[0].mxu0
        %v889 = vadd.f32 0.0, %v888
        %v890 = vpop.f32.mrb[0].mxu0
        %v891 = vpop.f32.mrb[0].mxu0
        %v892 = vpop.f32.mrb[0].mxu0
        %893 = vdwg.mxu0
        %v894 = vadd.f32 %v838, %v889
        %v895 = vld [vmem:[%s5] sm:$0xf]
        %897 = vset.pattern.permute.xlu0 0
        %898 = vperm.xlu0 %897, %v895
        %v899 = vpop.permute.xlu0 %898
        %v901 = vadd.f32 %v894, %v899
        %v902 = vmax.f32 %v901, 0.0
        %v903 = vld [vmem:[%s3] sm:$0xf]
        %v904 = vld [vmem:[%s3 + $0x4] sm:$0xf]
        %v905 = vpack.c.bf16 %v902, %v902
        %v906 = vld [vmem:[%s6] sm:$0xff]
        %v907 = vld [vmem:[%s6 + $0x8] sm:$0xff]
        %909 = vset.pattern.permute.xlu0 0
        %910 = vperm.xlu0 %909, %v906
        %v911 = vpop.permute.xlu0 %910
        %914 = vset.pattern.permute.xlu0 0
        %915 = vperm.xlu0 %914, %v907
        %v916 = vpop.permute.xlu0 %915
        %v920 = vunpack.c.l.b16 %v903
        %v921 = vunpack.c.l.b16 %v904
        %v922 = vpack.c.b16 %v921, %v920
        %v924 = vsel %vm415, %v922, 0
        %v927 = vsel %vm419, %v905, 0
        %929 = vmatprep.subr.bf16.mxu0 0
        %930 = vmatpush1.bf16.msra.mxu0 %v927
        %931 = vmatprep.subr.bf16.mxu0 0
        %932 = vmatpush1.bf16.msra.mxu0 0
        %933 = vmatprep.subr.bf16.mxu0 0
        %934 = vmatpush1.bf16.msra.mxu0 0
        %935 = vmatprep.subr.bf16.mxu0 0
        %936 = vmatpush1.bf16.msra.mxu0 0
        %937 = vmatprep.subr.bf16.mxu0 0
        %938 = vmatpush1.bf16.msra.mxu0 0
        %939 = vmatprep.subr.bf16.mxu0 0
        %940 = vmatpush1.bf16.msra.mxu0 0
        %941 = vmatprep.subr.bf16.mxu0 0
        %942 = vmatpush1.bf16.msra.mxu0 0
        %943 = vmatprep.subr.bf16.mxu0 0
        %944 = vmatpush1.bf16.msra.mxu0 0
        %945 = vmatprep.subr.bf16.mxu0 0
        %946 = vmatpush1.bf16.msra.mxu0 0
        %947 = vmatprep.subr.bf16.mxu0 0
        %948 = vmatpush1.bf16.msra.mxu0 0
        %949 = vmatprep.subr.bf16.mxu0 0
        %950 = vmatpush1.bf16.msra.mxu0 0
        %951 = vmatprep.subr.bf16.mxu0 0
        %952 = vmatpush1.bf16.msra.mxu0 0
        %953 = vmatprep.subr.bf16.mxu0 0
        %954 = vmatpush1.bf16.msra.mxu0 0
        %955 = vmatprep.subr.bf16.mxu0 0
        %956 = vmatpush1.bf16.msra.mxu0 0
        %957 = vmatprep.subr.bf16.mxu0 0
        %958 = vmatpush1.bf16.msra.mxu0 0
        %959 = vmatprep.subr.bf16.mxu0 0
        %960 = vmatpush1.bf16.msra.mxu0 0
        %961 = vmatprep.mubr.bf16.mxu0 0
        %962 = vmatmul.mubr.bf16.gmra.mrb[0].mxu0 %v924
        %v963 = vpop.f32.mrb[0].mxu0
        %v964 = vadd.f32 %v911, %v963
        %v965 = vpop.f32.mrb[0].mxu0
        %v966 = vpop.f32.mrb[0].mxu0
        %v967 = vadd.f32 %v916, %v966
        %v968 = vpop.f32.mrb[0].mxu0
        %969 = vdwg.mxu0
        %v970 = vadd.f32 %v964, %v343
        %v971 = vadd.f32 %v967, %v344
        %v972 = vmax.f32 %v970, 0.0
        %v973 = vmax.f32 %v971, 0.0
        %974 = vst [vmem:[%s341] sm:$0xff] %v972
        %975 = vst [vmem:[%s341 + $0x8] sm:$0xff] %v973
        %s976 = sand.u32 %s203, 1
        %s977 = scalar_lea.sflag [#allocation4], %s976
        %s978 = sand.u32 %s203, 1
        %s979 = smul.addr %s978, 16
        %s980 = scalar_lea.vmem [#allocation3], %s979
        // Predicated region
        $region91: #{tpu_custom_call.1} parent=85 // pred_check
          %p981 = pneg %p213
        $region92: #{tpu_custom_call.1} parent=85 // pred_check_branch
          %983 = sbr.rel (%p981) target = $region94
        $region93: #{tpu_custom_call.1} parent=85 // pred_region
          %s985 = ssub.s32 256, 256
          %986 = vsyncadd %s977, %s985
          %s987 = smul.addr %s22, 128
          %s988 = scalar_lea.hbm %s8, %s987
          %s989 = sshll.u32 %s980, 4
          %s990 = int_to_ptr.vmem [resolvable:$true] %s989
          %995 = dma.vmem_to_hbm [thread:$0]  %s990, 256, %s988, %s977, 128, 256, 8
        $region94: #{tpu_custom_call.1} parent=85 // pred_fallthru
          _
      $region86: #{tpu_custom_call.1} parent=5 // pred_fallthru
        _
      %p996 = scmp.le.s32.totalorder 2, %s17
      // Predicated region
      $region95: #{tpu_custom_call.1} parent=5 // pred_check
        %p997 = pneg %p996
      $region96: #{tpu_custom_call.1} parent=5 // pred_check_branch
        %999 = sbr.rel (%p997) target = $region98
      $region97: #{tpu_custom_call.1} parent=5 // pred_region
        %s1000 = ssub.s32 %s17, 2
        // Predicated region
        $region99: #{tpu_custom_call.1} parent=97 // pred_check
          %p1001 = pneg %p219
        $region100: #{tpu_custom_call.1} parent=97 // pred_check_branch
          %1003 = sbr.rel (%p1001) target = $region102
        $region101: #{tpu_custom_call.1} parent=97 // pred_region
          %s1004 = sand.u32 %s204, 1
          %s1005 = scalar_lea.sflag [#allocation4], %s1004
          %s1006 = sand.u32 %s204, 1
          %s1007 = smul.addr %s1006, 16
          %s1008 = scalar_lea.vmem [#allocation3], %s1007
          %1009 = dma.done %s1005, 256
        $region102: #{tpu_custom_call.1} parent=97 // pred_fallthru
          _
      $region98: #{tpu_custom_call.1} parent=5 // pred_fallthru
        _
    $region6: #{tpu_custom_call.1} parent=1 // loop_footer
      %s21 = sadd.s32 1, %s17
    $region7: #{tpu_custom_call.1} parent=1 // loop_footer_branch
      %16 = sbr.rel target = $region3
    $region8: #{tpu_custom_call.1} parent=1 // loop_exit
      _
    %1010 = vsyncpa [#allocation4], 1
    %s1011 = scalar_lea.sflag [#allocation4], 1
    %1012 = vsyncpa %s1011, 1

</llo_original>
